<compile_context>
chip_gen: v7x
topology: tpu7x:2x2x1
jax: 0.10.0
libtpu: 0.0.40
codegen_flags: <defaults>
</compile_context>

<pallas_src>
import math

import jax
import jax.numpy as jnp
from jax.experimental import pallas as pl
from jax.experimental.pallas import tpu as pltpu

_INV_SQRT2 = 1.0 / math.sqrt(2.0)

# Abramowitz & Stegun 7.1.26 erf approximation, max abs error <= 1.5e-7 in erf
# (well inside f32 noise for GELU at 1e-5 tolerance, but not bit-identical to
# torch.nn.functional.gelu). Uses only VPU/EUP ops guaranteed to lower in Mosaic.
# TODO(synk): switch to lax.erf inside the kernel if/when erf_p gets a Mosaic lowering.
_ERF_P = 0.3275911
_ERF_A1 = 0.254829592
_ERF_A2 = -0.284496736
_ERF_A3 = 1.421413741
_ERF_A4 = -1.453152027
_ERF_A5 = 1.061405429


def _erf_approx_f32(z):
    a = jnp.abs(z)
    d = 1.0 + _ERF_P * a
    # Reciprocal on the EUP slot (vrcp) + one Newton-Raphson step back to full f32
    # precision -> keeps the divide off the near-saturating VALU slot (v6e/v7x).
    t0 = pl.reciprocal(d, approx=True)
    t = t0 * (2.0 - d * t0)
    poly = t * (_ERF_A1 + t * (_ERF_A2 + t * (_ERF_A3 + t * (_ERF_A4 + t * _ERF_A5))))
    r = 1.0 - poly * jnp.exp(-(a * a))
    return jnp.where(z < 0.0, -r, r)


def _gelu_kernel(x_ref, o_ref):
    # f32 math regardless of I/O dtype (v5e has no bf16 VPU/EUP path).
    # TODO(synk): on v6e/v7x a mixed-precision bf16 polynomial would cut VALU work
    # for bf16 I/O; kept in f32 here for accuracy.
    x = x_ref[...].astype(jnp.float32)
    y = 0.5 * x * (1.0 + _erf_approx_f32(x * _INV_SQRT2))
    o_ref[...] = y.astype(o_ref.dtype)


def _round_up(x, m):
    return ((x + m - 1) // m) * m


def gelu_activation(x, *, target_tile_bytes=2 * 1024 * 1024):
    """Exact-erf GELU (HF GELUActivation.forward, eval mode) over any-shaped array."""
    shape, dtype = x.shape, x.dtype
    itemsize = jnp.dtype(dtype).itemsize
    total = int(math.prod(shape)) if shape else 1

    # Collapse leading dims only (never touches the minor-dim layout -> free).
    if x.ndim == 0:
        x2d = x.reshape(1, 1)
    elif x.ndim == 1:
        x2d = x.reshape(1, shape[0])
    else:
        x2d = x.reshape(-1, shape[-1])
    rows, H = x2d.shape

    # dtype-aware sublane packing: 8 rows (4B), 16 (2B), 32 (1B).
    sub = max(8, 32 // itemsize)

    # Lane tiling: keep the full minor dim unless it alone exceeds the tile budget
    # (only possible to split cleanly when it is 128-aligned).
    if H % 128 == 0 and H * itemsize > target_tile_bytes:
        tn = max(128, (target_tile_bytes // itemsize) // 128 * 128)
        tn = min(tn, H)
    else:
        tn = H

    # Row tiling: fill ~target_tile_bytes per block, rounded to the sublane
    # multiple, capped so the grid has >= 2 steps when possible (v7x: 2 TCs).
    bytes_per_row = max(1, tn * itemsize)
    if rows <= sub:
        tm = rows  # block equals full row extent (allowed by the (8,128) rule)
    else:
        tm = max(sub, (target_tile_bytes // bytes_per_row) // sub * sub)
        tm = min(tm, _round_up(pl.cdiv(rows, 2), sub))
        tm = min(tm, _round_up(rows, sub))

    grid = (pl.cdiv(rows, tm), pl.cdiv(H, tn))
    # Partial edge blocks are handled by Pallas (OOB reads ignored on store).

    cost = pl.CostEstimate(
        flops=18 * total,            # ~18 VPU ops per element (poly + NR + mul/add)
        transcendentals=2 * total,   # one exp + one vrcp per element
        bytes_accessed=2 * total * itemsize,
    )

    out2d = pl.pallas_call(
        _gelu_kernel,
        out_shape=jax.ShapeDtypeStruct((rows, H), dtype),
        grid_spec=pltpu.PrefetchScalarGridSpec(
            num_scalar_prefetch=0,
            grid=grid,
            in_specs=[pl.BlockSpec((tm, tn), lambda i, j: (i, j))],
            out_specs=pl.BlockSpec((tm, tn), lambda i, j: (i, j)),
        ),
        compiler_params=pltpu.CompilerParams(
            dimension_semantics=("parallel", "parallel")),
        cost_estimate=cost,
    )(x2d)

    return out2d.reshape(shape)


if __name__ == "__main__":
    key = jax.random.PRNGKey(0)
    k1, k2 = jax.random.split(key)

    # Lane-aligned transformer-style activation (fast path, unmasked stores).
    x1 = jax.random.normal(k1, (2, 8, 256), dtype=jnp.float32)
    # Non-128-aligned minor dim (full-minor-dim block path).
    x2 = jax.random.normal(k2, (2, 8, 32), dtype=jnp.float32)

    out1 = jax.block_until_ready(gelu_activation(x1))
    out2 = jax.block_until_ready(gelu_activation(x2))

    # Reference: exact (erf-based) GELU, identical to torch.nn.functional.gelu default.
    ref1 = jax.nn.gelu(x1, approximate=False)
    ref2 = jax.nn.gelu(x2, approximate=False)

    assert out1.shape == x1.shape and out2.shape == x2.shape
    assert jnp.allclose(out1, ref1, atol=1e-5, rtol=1e-5)
    assert jnp.allclose(out2, ref2, atol=1e-5, rtol=1e-5)

    print("KERNEL_OK")
</pallas_src>

<mosaic_0001>
module attributes {stable_mosaic.version = 11 : i64} {
  func.func @_gelu_kernel(%arg0: i32, %arg1: i32, %arg2: memref<8x256xf32, #tpu.memory_space<vmem>>, %arg3: memref<8x256xf32, #tpu.memory_space<vmem>>) attributes {dimension_semantics = [#tpu.dimension_semantics<parallel>, #tpu.dimension_semantics<parallel>], iteration_bounds = array<i64: 2, 1>, scalar_prefetch = 0 : i64, scratch_operands = 0 : i64, tpu.core_type = #tpu.core_type<tc>, window_params = [{transform_indices = @transform_0, window_bounds = array<i64: 8, 256>}, {transform_indices = @transform_1, window_bounds = array<i64: 8, 256>}]} {
    %c0 = arith.constant 0 : index
    %c0_0 = arith.constant 0 : index
    %0 = vector.load %arg2[%c0, %c0_0] : memref<8x256xf32, #tpu.memory_space<vmem>>, vector<8x256xf32>
    %cst = arith.constant 5.000000e-01 : f32
    %1 = vector.broadcast %cst : f32 to vector<8x256xf32>
    %2 = arith.mulf %1, %0 : vector<8x256xf32>
    %cst_1 = arith.constant 0.707106769 : f32
    %3 = vector.broadcast %cst_1 : f32 to vector<8x256xf32>
    %4 = arith.mulf %0, %3 : vector<8x256xf32>
    %5 = math.absf %4 : vector<8x256xf32>
    %cst_2 = arith.constant 0.327591091 : f32
    %6 = vector.broadcast %cst_2 : f32 to vector<8x256xf32>
    %7 = arith.mulf %6, %5 : vector<8x256xf32>
    %cst_3 = arith.constant 1.000000e+00 : f32
    %8 = vector.broadcast %cst_3 : f32 to vector<8x256xf32>
    %9 = arith.addf %8, %7 : vector<8x256xf32>
    %10 = tpu.reciprocal %9 {approx = true} : vector<8x256xf32> -> vector<8x256xf32>
    %11 = arith.mulf %9, %10 : vector<8x256xf32>
    %cst_4 = arith.constant 2.000000e+00 : f32
    %12 = vector.broadcast %cst_4 : f32 to vector<8x256xf32>
    %13 = arith.subf %12, %11 : vector<8x256xf32>
    %14 = arith.mulf %10, %13 : vector<8x256xf32>
    %cst_5 = arith.constant 1.06140542 : f32
    %15 = vector.broadcast %cst_5 : f32 to vector<8x256xf32>
    %16 = arith.mulf %14, %15 : vector<8x256xf32>
    %cst_6 = arith.constant -1.45315206 : f32
    %17 = vector.broadcast %cst_6 : f32 to vector<8x256xf32>
    %18 = arith.addf %17, %16 : vector<8x256xf32>
    %19 = arith.mulf %14, %18 : vector<8x256xf32>
    %cst_7 = arith.constant 1.42141378 : f32
    %20 = vector.broadcast %cst_7 : f32 to vector<8x256xf32>
    %21 = arith.addf %20, %19 : vector<8x256xf32>
    %22 = arith.mulf %14, %21 : vector<8x256xf32>
    %cst_8 = arith.constant -0.284496725 : f32
    %23 = vector.broadcast %cst_8 : f32 to vector<8x256xf32>
    %24 = arith.addf %23, %22 : vector<8x256xf32>
    %25 = arith.mulf %14, %24 : vector<8x256xf32>
    %cst_9 = arith.constant 0.254829586 : f32
    %26 = vector.broadcast %cst_9 : f32 to vector<8x256xf32>
    %27 = arith.addf %26, %25 : vector<8x256xf32>
    %28 = arith.mulf %14, %27 : vector<8x256xf32>
    %29 = arith.mulf %5, %5 : vector<8x256xf32>
    %cst_10 = arith.constant 0.000000e+00 : f32
    %30 = vector.broadcast %cst_10 : f32 to vector<8x256xf32>
    %31 = arith.subf %30, %29 : vector<8x256xf32>
    %32 = math.exp %31 : vector<8x256xf32>
    %33 = arith.mulf %28, %32 : vector<8x256xf32>
    %cst_11 = arith.constant 1.000000e+00 : f32
    %34 = vector.broadcast %cst_11 : f32 to vector<8x256xf32>
    %35 = arith.subf %34, %33 : vector<8x256xf32>
    %cst_12 = arith.constant 0.000000e+00 : f32
    %36 = vector.broadcast %cst_12 : f32 to vector<8x256xf32>
    %37 = arith.cmpf olt, %4, %36 : vector<8x256xf32>
    %cst_13 = arith.constant 0.000000e+00 : f32
    %38 = vector.broadcast %cst_13 : f32 to vector<8x256xf32>
    %39 = arith.subf %38, %35 : vector<8x256xf32>
    %40 = arith.select %37, %39, %35 : vector<8x256xi1>, vector<8x256xf32>
    %cst_14 = arith.constant 1.000000e+00 : f32
    %41 = vector.broadcast %cst_14 : f32 to vector<8x256xf32>
    %42 = arith.addf %41, %40 : vector<8x256xf32>
    %43 = arith.mulf %2, %42 : vector<8x256xf32>
    %c0_15 = arith.constant 0 : index
    %c0_16 = arith.constant 0 : index
    %44 = vector.load %arg3[%c0_15, %c0_16] : memref<8x256xf32, #tpu.memory_space<vmem>>, vector<8x256xf32>
    tpu.vector_store %arg3[%c0_15, %c0_16], %43 {strides = array<i32>} : memref<8x256xf32, #tpu.memory_space<vmem>>, vector<8x256xf32>,
    return
  }
  func.func @transform_0(%arg0: i32, %arg1: i32) -> (i32, i32) {
    %c0_i32 = arith.constant 0 : i32
    return %arg0, %arg1 : i32, i32
  }
  func.func @transform_1(%arg0: i32, %arg1: i32) -> (i32, i32) {
    %c0_i32 = arith.constant 0 : i32
    return %arg0, %arg1 : i32, i32
  }
}

</mosaic_0001>

<llo_original>
// kernel: tpu_custom_call.1
$region0: #{tpu_custom_call.1}
  #allocation0 [shape = 'u32[]', space=smem, size = 0x4, offset = 0x4, fixed_abs, tag = 'smem constant byte address 0x4 - core index']
  #allocation1 [shape = 'u32[144,128]{1,0:T(1,128)}', space=vmem, size = 0x12000, scoped, tag = 'internal scratch']
  %s0 = inlined_call_operand.hbm [shape: f32[16,256], index: 0, kind: input, shape index: {}]
  %s1 = inlined_call_operand.hbm [shape: f32[16,256], index: 1, kind: output, shape index: {}]
  %s2 = sld [smem:[#allocation0]]
  $region41: #{tpu_custom_call.1} parent=0
    _
  %s4 = ssub.s32 1, %s2
  %s5 = scalar_select 0, %s4, %s2
  $region1: #{tpu_custom_call.1} parent=0
    #allocation2 [shape = 'u8[16384]{0}', space=vmem, size = 0x4000, scoped, tag = 'input window, operand 0']
    #allocation3 [shape = 's32[2]{0}', space=sflag, size = 0x8, scoped, tag = 'scoped memory for tpu_custom_call.1']
    #allocation4 [shape = 's32[2]{0}', space=sflag, size = 0x8, scoped, tag = 'scoped memory for tpu_custom_call.1']
    #allocation5 [shape = 'u8[16384]{0}', space=vmem, size = 0x4000, scoped, tag = 'output window, operand 0']
    %6 = vsyncpa [#allocation3], 0
    %s7 = scalar_lea.sflag [#allocation3], 1
    %8 = vsyncpa %s7, 0
    %9 = vsyncpa [#allocation4], 0
    %s10 = scalar_lea.sflag [#allocation4], 1
    %11 = vsyncpa %s10, 0
    loop: start=0, step=1, limit=4
    $region2: #{tpu_custom_call.1} parent=1 // loop_pre_header
      _
    $region3: #{tpu_custom_call.1} parent=1 // loop_header
      %s13 = sphi 0, %s17
      %p14 = scmp.ge.s32.totalorder %s13, 4
      %s20 = sphi 0, %s32
      %s21 = sphi 0, %s28
      %s22 = sphi 0, %s20
      %s23 = sphi 0, %s21
      %s24 = sphi 0, %s22
      %s25 = sphi 0, %s23
      %s37 = sphi 0, %s39
      %s40 = sphi 0, %s37
      %s41 = sphi 0, %s40
      %s57 = sphi 0, %s41
      %s65 = sphi 0, %s67
      %s68 = sphi 0, %s65
      %s69 = sphi 0, %s68
      %s85 = sphi 0, %s69
    $region4: #{tpu_custom_call.1} parent=1 // loop_header_branch
      %16 = sbr.rel (%p14) target = $region8
    $region5: #{tpu_custom_call.1} parent=1 // loop_body
      %s18 = ssub.s32 %s13, 1
      %s19 = ssub.s32 %s13, 2
      %s26 = sadd.s32 1, %s21
      %p27 = scmp.ge.s32.totalorder %s26, 1
      %s28 = scalar_select %p27, 0, %s26
      %s29 = sadd.s32 1, %s20
      %s30 = scalar_select %p27, %s29, %s20
      %p31 = scmp.ge.s32.totalorder %s30, 2
      %s32 = scalar_select %p31, 0, %s30
      %s33 = ssub.s32 %s20, %s32
      %s34 = ssub.s32 %s21, %s28
      %s35 = sor.u32 %s33, %s34
      %p36 = scmp.eq.s32.totalorder %s35, 0
      %s38 = sadd.s32 %s37, 1
      %s39 = scalar_select %p36, %s37, %s38
      %p42 = pneg %p36
      %p43 = scmp.eq.s32.totalorder %s13, 1
      %p44 = por %p42, %p43
      %p45 = scmp.ne.s32.totalorder %s37, %s40
      %p46 = scmp.eq.s32.totalorder %s13, 0
      %p47 = por %p45, %p46
      %p48 = scmp.ne.s32.totalorder %s37, %s40
      %p49 = scmp.eq.s32.totalorder %s18, 1
      %p50 = por %p48, %p49
      %p51 = scmp.ne.s32.totalorder %s40, %s41
      %p52 = scmp.eq.s32.totalorder %s18, 0
      %p53 = por %p51, %p52
      %p54 = scmp.ne.s32.totalorder %s40, %s41
      %p55 = scmp.eq.s32.totalorder %s19, 1
      %p56 = por %p54, %p55
      %p58 = scmp.ne.s32.totalorder %s41, %s57
      %p59 = scmp.eq.s32.totalorder %s19, 0
      %p60 = por %p58, %p59
      %s61 = ssub.s32 %s20, %s32
      %s62 = ssub.s32 %s21, %s28
      %s63 = sor.u32 %s61, %s62
      %p64 = scmp.eq.s32.totalorder %s63, 0
      %s66 = sadd.s32 %s65, 1
      %s67 = scalar_select %p64, %s65, %s66
      %p70 = pneg %p64
      %p71 = scmp.eq.s32.totalorder %s13, 1
      %p72 = por %p70, %p71
      %p73 = scmp.ne.s32.totalorder %s65, %s68
      %p74 = scmp.eq.s32.totalorder %s13, 0
      %p75 = por %p73, %p74
      %p76 = scmp.ne.s32.totalorder %s65, %s68
      %p77 = scmp.eq.s32.totalorder %s18, 1
      %p78 = por %p76, %p77
      %p79 = scmp.ne.s32.totalorder %s68, %s69
      %p80 = scmp.eq.s32.totalorder %s18, 0
      %p81 = por %p79, %p80
      %p82 = scmp.ne.s32.totalorder %s68, %s69
      %p83 = scmp.eq.s32.totalorder %s19, 1
      %p84 = por %p82, %p83
      %p86 = scmp.ne.s32.totalorder %s69, %s85
      %p87 = scmp.eq.s32.totalorder %s19, 0
      %p88 = por %p86, %p87
      %p89 = scmp.le.s32.totalorder 1, %s13
      %p90 = scmp.lt.s32.totalorder %s13, 3
      %p91 = pnand %p89, %p90
      %p92 = pneg %p91
      // Predicated region
      $region9: #{tpu_custom_call.1} parent=5 // pred_check
        _
      $region10: #{tpu_custom_call.1} parent=5 // pred_check_branch
        %94 = sbr.rel (%p91) target = $region12
      $region11: #{tpu_custom_call.1} parent=5 // pred_region
        %s95 = ssub.s32 %s13, 1
      $region12: #{tpu_custom_call.1} parent=5 // pred_fallthru
        _
      %p96 = scmp.lt.s32.totalorder %s13, 2
      // Predicated region
      $region13: #{tpu_custom_call.1} parent=5 // pred_check
        %p97 = pneg %p96
      $region14: #{tpu_custom_call.1} parent=5 // pred_check_branch
        %99 = sbr.rel (%p97) target = $region16
      $region15: #{tpu_custom_call.1} parent=5 // pred_region
        // Predicated region
        $region17: #{tpu_custom_call.1} parent=15 // pred_check
          %p100 = pneg %p47
        $region18: #{tpu_custom_call.1} parent=15 // pred_check_branch
          %102 = sbr.rel (%p100) target = $region20
        $region19: #{tpu_custom_call.1} parent=15 // pred_region
          %s103 = sand.u32 %s37, 1
          %s104 = scalar_lea.sflag [#allocation3], %s103
          %s105 = sand.u32 %s37, 1
          %s106 = smul.addr %s105, 16
          %s107 = scalar_lea.vmem [#allocation2], %s106
          %s108 = smul.u32 2, %s21
          %s110 = ssub.s32 256, 256
          %111 = vsyncadd %s104, %s110
          %s112 = smul.addr %s20, 2
          %s113 = sadd.s32 %s108, %s112
          %s114 = smul.addr %s113, 128
          %s115 = scalar_lea.hbm %s0, %s114
          %s117 = sshll.u32 %s107, 4
          %s118 = int_to_ptr.vmem [resolvable:$true] %s117
          %120 = dma.hbm_to_vmem [thread:$0]  %s115, 256, %s118, %s104
        $region20: #{tpu_custom_call.1} parent=15 // pred_fallthru
          _
      $region16: #{tpu_custom_call.1} parent=5 // pred_fallthru
        _
      %p121 = scmp.le.s32.totalorder 1, %s13
      %p122 = scmp.lt.s32.totalorder %s13, 3
      %p123 = pnand %p121, %p122
      %p124 = pneg %p123
      // Predicated region
      $region21: #{tpu_custom_call.1} parent=5 // pred_check
        _
      $region22: #{tpu_custom_call.1} parent=5 // pred_check_branch
        %126 = sbr.rel (%p123) target = $region24
      $region23: #{tpu_custom_call.1} parent=5 // pred_region
        %s127 = ssub.s32 %s13, 1
        %s128 = sand.u32 %s40, 1
        %s129 = scalar_lea.sflag [#allocation3], %s128
        %s130 = sand.u32 %s40, 1
        %s131 = smul.addr %s130, 16
        %s132 = scalar_lea.vmem [#allocation2], %s131
        // Predicated region
        $region25: #{tpu_custom_call.1} parent=23 // pred_check
          %p133 = pneg %p53
        $region26: #{tpu_custom_call.1} parent=23 // pred_check_branch
          %135 = sbr.rel (%p133) target = $region28
        $region27: #{tpu_custom_call.1} parent=23 // pred_region
          %136 = dma.done %s129, 256
        $region28: #{tpu_custom_call.1} parent=23 // pred_fallthru
          _
        %s137 = sand.u32 %s40, 1
        %s138 = scalar_lea.sflag [#allocation3], %s137
        %s139 = sand.u32 %s40, 1
        %s140 = smul.addr %s139, 16
        %s141 = scalar_lea.vmem [#allocation2], %s140
        %p142 = pneg %p53
        %p143 = pneg %p50
        %p144 = pneg %p81
        %p145 = pneg %p78
        %s146 = sand.u32 %s68, 1
        %s147 = scalar_lea.sflag [#allocation4], %s146
        %s148 = sand.u32 %s68, 1
        %s149 = smul.addr %s148, 16
        %s150 = scalar_lea.vmem [#allocation5], %s149
        %s151 = smul.u32 2, %s23
        %s152 = smul.u32 2, %s23
        %v153 = vld [vmem:[%s132] sm:$0xff]
        %v154 = vld [vmem:[%s132 + $0x8] sm:$0xff]
        %v155 = vmul.f32 %v153, 0.5
        %v156 = vmul.f32 %v154, 0.5
        %v157 = vmul.f32 %v153, 0.70710677
        %v158 = vmul.f32 %v154, 0.70710677
        %v159 = vand.u32 2147483647, %v157
        %v160 = vand.u32 2147483647, %v158
        %v161 = vmul.f32 %v159, 0.3275911
        %v162 = vmul.f32 %v160, 0.3275911
        %v163 = vadd.f32 %v161, 1.0
        %v164 = vadd.f32 %v162, 1.0
        %v165 = vrcp.pop %v163
        %v166 = vrcp.pop %v164
        %v167 = vmul.f32 %v163, %v165
        %v168 = vmul.f32 %v164, %v166
        %v169 = vsub.f32 2.0, %v167
        %v170 = vsub.f32 2.0, %v168
        %v171 = vmul.f32 %v165, %v169
        %v172 = vmul.f32 %v166, %v170
        %v173 = vmul.f32 %v171, 1.0614054
        %v174 = vmul.f32 %v172, 1.0614054
        %v175 = vadd.f32 %v173, -1.4531521
        %v176 = vadd.f32 %v174, -1.4531521
        %v177 = vmul.f32 %v171, %v175
        %v178 = vmul.f32 %v172, %v176
        %v179 = vadd.f32 %v177, 1.4214138
        %v180 = vadd.f32 %v178, 1.4214138
        %v181 = vmul.f32 %v171, %v179
        %v182 = vmul.f32 %v172, %v180
        %v183 = vadd.f32 %v181, -0.28449672
        %v184 = vadd.f32 %v182, -0.28449672
        %v185 = vmul.f32 %v171, %v183
        %v186 = vmul.f32 %v172, %v184
        %v187 = vadd.f32 %v185, 0.2548296
        %v188 = vadd.f32 %v186, 0.2548296
        %v189 = vmul.f32 %v171, %v187
        %v190 = vmul.f32 %v172, %v188
        %v191 = vmul.f32 %v159, %v159
        %v192 = vmul.f32 %v160, %v160
        %v193 = vsub.f32 0.0, %v191
        %v194 = vsub.f32 0.0, %v192
        %v195 = vmul.f32 %v193, 1.442695
        %v196 = vpow.pop %v195
        %v197 = vmul.f32 %v194, 1.442695
        %v198 = vpow.pop %v197
        %v199 = vmul.f32 %v189, %v196
        %v200 = vmul.f32 %v190, %v198
        %v201 = vsub.f32 1.0, %v199
        %v202 = vsub.f32 1.0, %v200
        %vm203 = vcmp.lt.f32.partialorder %v157, 0.0
        %vm204 = vcmp.lt.f32.partialorder %v158, 0.0
        %v205 = vsub.f32 0.0, %v201
        %v206 = vsub.f32 0.0, %v202
        %v207 = vsel %vm203, %v205, %v201
        %v208 = vsel %vm204, %v206, %v202
        %v209 = vadd.f32 %v207, 1.0
        %v210 = vadd.f32 %v208, 1.0
        %v211 = vmul.f32 %v155, %v209
        %v212 = vmul.f32 %v156, %v210
        %213 = vst [vmem:[%s150] sm:$0xff] %v211
        %214 = vst [vmem:[%s150 + $0x8] sm:$0xff] %v212
        %s215 = sand.u32 %s68, 1
        %s216 = scalar_lea.sflag [#allocation4], %s215
        %s217 = sand.u32 %s68, 1
        %s218 = smul.addr %s217, 16
        %s219 = scalar_lea.vmem [#allocation5], %s218
        // Predicated region
        $region29: #{tpu_custom_call.1} parent=23 // pred_check
          %p220 = pneg %p78
        $region30: #{tpu_custom_call.1} parent=23 // pred_check_branch
          %222 = sbr.rel (%p220) target = $region32
        $region31: #{tpu_custom_call.1} parent=23 // pred_region
          %s223 = smul.u32 2, %s23
          %s225 = ssub.s32 256, 256
          %226 = vsyncadd %s216, %s225
          %s227 = smul.addr %s22, 2
          %s228 = sadd.s32 %s223, %s227
          %s229 = smul.addr %s228, 128
          %s230 = scalar_lea.hbm %s1, %s229
          %s232 = sshll.u32 %s219, 4
          %s233 = int_to_ptr.vmem [resolvable:$true] %s232
          %235 = dma.vmem_to_hbm [thread:$0]  %s233, 256, %s230, %s216
        $region32: #{tpu_custom_call.1} parent=23 // pred_fallthru
          _
      $region24: #{tpu_custom_call.1} parent=5 // pred_fallthru
        _
      %p236 = scmp.le.s32.totalorder 2, %s13
      // Predicated region
      $region33: #{tpu_custom_call.1} parent=5 // pred_check
        %p237 = pneg %p236
      $region34: #{tpu_custom_call.1} parent=5 // pred_check_branch
        %239 = sbr.rel (%p237) target = $region36
      $region35: #{tpu_custom_call.1} parent=5 // pred_region
        %s240 = ssub.s32 %s13, 2
        // Predicated region
        $region37: #{tpu_custom_call.1} parent=35 // pred_check
          %p241 = pneg %p84
        $region38: #{tpu_custom_call.1} parent=35 // pred_check_branch
          %243 = sbr.rel (%p241) target = $region40
        $region39: #{tpu_custom_call.1} parent=35 // pred_region
          %s244 = sand.u32 %s69, 1
          %s245 = scalar_lea.sflag [#allocation4], %s244
          %s246 = sand.u32 %s69, 1
          %s247 = smul.addr %s246, 16
          %s248 = scalar_lea.vmem [#allocation5], %s247
          %249 = dma.done %s245, 256
        $region40: #{tpu_custom_call.1} parent=35 // pred_fallthru
          _
      $region36: #{tpu_custom_call.1} parent=5 // pred_fallthru
        _
    $region6: #{tpu_custom_call.1} parent=1 // loop_footer
      %s17 = sadd.s32 1, %s13
    $region7: #{tpu_custom_call.1} parent=1 // loop_footer_branch
      %12 = sbr.rel target = $region3
    $region8: #{tpu_custom_call.1} parent=1 // loop_exit
      _
    %250 = vsyncpa [#allocation3], 1
    %s251 = scalar_lea.sflag [#allocation3], 1
    %252 = vsyncpa %s251, 1
    %253 = vsyncpa [#allocation4], 1
    %s254 = scalar_lea.sflag [#allocation4], 1
    %255 = vsyncpa %s254, 1

</llo_original>
